<compile_context>
chip_gen: v7x
topology: tpu7x:2x2x1
jax: 0.10.0
libtpu: 0.0.40
codegen_flags: <defaults>
</compile_context>

<pallas_src>
import functools
import math

import jax
import jax.numpy as jnp
from jax.experimental import pallas as pl
from jax.experimental.pallas import tpu as pltpu


# -----------------------------------------------------------------------------
# One-time probes (run eagerly at start-up, outside jit).
# -----------------------------------------------------------------------------
def _roll_is_forward():
    """Does pltpu.roll follow the jnp.roll convention (out[i] = x[(i - shift) % n])?"""
    def k(x_ref, o_ref):
        o_ref[...] = pltpu.roll(x_ref[...], shift=1, axis=1)

    x = jnp.arange(8 * 128, dtype=jnp.float32).reshape(8, 128)
    y = pl.pallas_call(k, out_shape=jax.ShapeDtypeStruct((8, 128), jnp.float32))(x)
    return bool(y[0, 1] == 0.0)


def _roll_supports_bf16():
    """Can pltpu.roll lower for packed bf16 on this Mosaic build?"""
    def k(x_ref, o_ref):
        o_ref[...] = pltpu.roll(x_ref[...], shift=1, axis=1)

    x = jnp.zeros((16, 256), jnp.bfloat16)
    try:
        jax.block_until_ready(
            pl.pallas_call(k, out_shape=jax.ShapeDtypeStruct((16, 256), jnp.bfloat16))(x))
        return True
    except Exception:
        return False


def _pick_tb(batch, max_tb=8):
    """Images folded per grid step; keep >= 2 grid steps when possible (v7x: 2 TensorCores)."""
    tb = 1
    for cand in (8, 4, 2):
        if cand <= max_tb and batch % cand == 0:
            tb = cand
            break
    while tb > 1 and batch // tb < 2:
        tb //= 2
    return tb


# -----------------------------------------------------------------------------
# Fused conv3x3 (stride 1, pad 1) + bias + ReLU + 2x2 maxpool, batch-blocked.
#
# Per grid step: four pooling-phase slabs of shape (C, TB*Lpad) (bf16), TB images side by side in
# the lane dim, each image a 128-aligned Lpad segment with 2 zero halo rows above/below.  The four
# pooled-output phases are each 9 accumulated bf16 MXU matmuls over lane-shifted (pltpu.roll) tap
# slabs, max-reduced into one pooled activation; the full-resolution conv output never hits HBM.
# -----------------------------------------------------------------------------
def _conv_pool_kernel(q00_ref, q01_ref, q10_ref, q11_ref, w_ref, b_ref, o_ref,
                      *, Hh, Wh, Lpad, TB, roll_forward, roll_bf16):
    N = Hh * Wh
    WT = TB * Lpad
    qrefs = ((q00_ref, q01_ref), (q10_ref, q11_ref))

    # W-border masks (per output column).  Lpad % Wh == 0, so one mod covers all TB segments.
    col = jax.lax.broadcasted_iota(jnp.int32, (1, WT), 1) % Wh
    mask_l = col != 0            # kill wrapped reads of the "column -1" taps (ds == -1)
    mask_r = col != (Wh - 1)     # kill wrapped reads of the "column +1" taps (ds == +1)

    def tap_slab(p, q, dr, ds):
        # slab[c, j] = phase(p,q)[c, j + start] for every per-image window lane j.
        start = (2 + dr) * Wh + ds
        sl = qrefs[p][q][0]                        # (C, WT) bf16, read at use site
        if not roll_bf16:
            sl = sl.astype(jnp.float32)            # fallback only if bf16 roll won't lower
        shift = (-start) % WT if roll_forward else start % WT
        sl = pltpu.roll(sl, shift=shift, axis=1)
        if ds == -1:
            sl = jnp.where(mask_l, sl, jnp.zeros_like(sl))
        elif ds == 1:
            sl = jnp.where(mask_r, sl, jnp.zeros_like(sl))
        return sl.astype(jnp.bfloat16)

    pooled = None
    for a in range(2):               # row parity inside the 2x2 pooling window
        for b in range(2):           # column parity
            acc = None
            for kh in range(3):
                u = a + kh - 1
                p, dr = u % 2, (u - u % 2) // 2
                for kw in range(3):
                    v = b + kw - 1
                    q, ds = v % 2, (v - v % 2) // 2
                    d = jnp.dot(w_ref[kh * 3 + kw], tap_slab(p, q, dr, ds),
                                preferred_element_type=jnp.float32)
                    acc = d if acc is None else acc + d
            y = jnp.maximum(acc + b_ref[...], 0.0)              # bias + ReLU (f32)
            pooled = y if pooled is None else jnp.maximum(pooled, y)

    # Per-image 128-aligned windows -> bf16 (TB, O, N) output block (CHW-flat spatial).
    for t in range(TB):
        o_ref[t] = pooled[:, t * Lpad: t * Lpad + N].astype(o_ref.dtype)


def conv3x3_relu_pool(x_bchw, w_taps, bias, *, tb, roll_forward, roll_bf16):
    """Conv2d(k=3, s=1, p=1) + ReLU + MaxPool2d(2,2): (B,C,H,W) -> (B,O,(H//2)*(W//2)) bf16."""
    B, C, H, W = x_bchw.shape
    O = w_taps.shape[1]
    Hh, Wh = H // 2, W // 2
    N = Hh * Wh
    L = (Hh + 4) * Wh                                  # 2 zero halo rows above and below
    unit = (128 * Wh) // math.gcd(128, Wh)             # Lpad % 128 == 0 and Lpad % Wh == 0
    Lpad = ((L + unit - 1) // unit) * unit
    G = B // tb
    WT = tb * Lpad

    # 2x2 pooling-phase views of the raw input (no im2col), halo-padded, flattened channel-major,
    # then TB images folded into the lane dimension (one Lpad-wide segment per image).
    phases = []
    for p in range(2):
        for q in range(2):
            ph = x_bchw[:, :, p::2, q::2]                               # (B, C, Hh, Wh)
            ph = jnp.pad(ph, ((0, 0), (0, 0), (2, 2), (0, 0)))
            ph = ph.reshape(B, C, L)
            ph = jnp.pad(ph, ((0, 0), (0, 0), (0, Lpad - L)))
            ph = ph.reshape(G, tb, C, Lpad).transpose(0, 2, 1, 3).reshape(G, C, WT)
            phases.append(ph.astype(jnp.bfloat16))

    kernel = functools.partial(_conv_pool_kernel, Hh=Hh, Wh=Wh, Lpad=Lpad, TB=tb,
                               roll_forward=roll_forward, roll_bf16=roll_bf16)
    return pl.pallas_call(
        kernel,
        out_shape=jax.ShapeDtypeStruct((B, O, N), jnp.bfloat16),
        grid=(G,),
        in_specs=[pl.BlockSpec((1, C, WT), lambda i: (i, 0, 0)) for _ in range(4)]
                + [pl.BlockSpec((9, O, C), lambda i: (0, 0, 0)),
                   pl.BlockSpec((O, 1), lambda i: (0, 0))],
        out_specs=pl.BlockSpec((tb, O, N), lambda i: (i, 0, 0)),
        compiler_params=pltpu.CompilerParams(dimension_semantics=("parallel",)),
    )(*phases, w_taps, bias)


# -----------------------------------------------------------------------------
# Fused fc1 (+ReLU) + fc2 (+sigmoid) head.  fc2 (N=1) is a VPU multiply + lane reduction.
# -----------------------------------------------------------------------------
def _fc_head_kernel(x_ref, w1_ref, b1_ref, w2_ref, b2_ref, o_ref):
    h = jnp.dot(x_ref[...], w1_ref[...], preferred_element_type=jnp.float32)
    h = jnp.maximum(h + b1_ref[...], 0.0)                              # fc1 + ReLU
    z = jnp.sum(h * w2_ref[...], axis=1, keepdims=True) + b2_ref[...]  # fc2 (K=128, N=1)
    o_ref[...] = (0.5 * (jnp.tanh(0.5 * z) + 1.0)).astype(o_ref.dtype)  # stable sigmoid


def fc_head(x, w1t, b1, w2row, b2):
    B, K = x.shape
    Nh = w1t.shape[1]
    tb = B if B <= 512 else (256 if B % 256 == 0 else B)   # feat is tiny: whole batch per block
    G = B // tb
    return pl.pallas_call(
        _fc_head_kernel,
        out_shape=jax.ShapeDtypeStruct((B, 1), jnp.float32),
        grid=(G,),
        in_specs=[pl.BlockSpec((tb, K), lambda i: (i, 0)),
                  pl.BlockSpec((K, Nh), lambda i: (0, 0)),
                  pl.BlockSpec((1, Nh), lambda i: (0, 0)),
                  pl.BlockSpec((1, Nh), lambda i: (0, 0)),
                  pl.BlockSpec((1, 1), lambda i: (0, 0))],
        out_specs=pl.BlockSpec((tb, 1), lambda i: (i, 0)),
        compiler_params=pltpu.CompilerParams(dimension_semantics=("parallel",)),
    )(x, w1t, b1, w2row, b2)


# -----------------------------------------------------------------------------
# Forward pass (matches PyTorch CNN.forward) and parameter prep.
# -----------------------------------------------------------------------------
def prepare_params(params):
    """One-time weight layout prep (outside jit): tap-major conv weights, transposed fc weights."""
    bf16, f32 = jnp.bfloat16, jnp.float32
    return {
        "w1t": jnp.transpose(params["w1"], (2, 3, 0, 1)).reshape(9, 32, 3).astype(bf16),
        "b1": params["b1"].reshape(32, 1).astype(f32),
        "w2t": jnp.transpose(params["w2"], (2, 3, 0, 1)).reshape(9, 32, 32).astype(bf16),
        "b2": params["b2"].reshape(32, 1).astype(f32),
        "wfc1t": params["wfc1"].T.astype(bf16),                   # (4608, 128)
        "bfc1": params["bfc1"].reshape(1, 128).astype(f32),
        "wfc2row": params["wfc2"].reshape(1, 128).astype(f32),    # row vector for VPU fc2
        "bfc2": params["bfc2"].reshape(1, 1).astype(f32),
    }


def cnn_forward(x_nchw, kp, *, roll_forward, roll_bf16):
    B, _, H, W = x_nchw.shape
    tb = _pick_tb(B)
    h = conv3x3_relu_pool(x_nchw, kp["w1t"], kp["b1"], tb=tb,
                          roll_forward=roll_forward, roll_bf16=roll_bf16)   # (B, 32, 576) bf16
    h = h.reshape(B, 32, H // 2, W // 2)
    h = conv3x3_relu_pool(h, kp["w2t"], kp["b2"], tb=tb,
                          roll_forward=roll_forward, roll_bf16=roll_bf16)   # (B, 32, 144) bf16
    feat = h.reshape(B, -1)              # == torch's NCHW view(-1, 32*12*12); already bf16
    return fc_head(feat, kp["wfc1t"], kp["bfc1"], kp["wfc2row"], kp["bfc2"])


def init_params(key):
    ks = jax.random.split(key, 8)
    s = 0.05
    return {
        "w1":   s * jax.random.normal(ks[0], (32, 3, 3, 3), jnp.float32),
        "b1":   s * jax.random.normal(ks[1], (32,), jnp.float32),
        "w2":   s * jax.random.normal(ks[2], (32, 32, 3, 3), jnp.float32),
        "b2":   s * jax.random.normal(ks[3], (32,), jnp.float32),
        "wfc1": s * jax.random.normal(ks[4], (128, 32 * 12 * 12), jnp.float32),
        "bfc1": s * jax.random.normal(ks[5], (128,), jnp.float32),
        "wfc2": s * jax.random.normal(ks[6], (1, 128), jnp.float32),
        "bfc2": s * jax.random.normal(ks[7], (1,), jnp.float32),
    }


def reference_forward(x, params):
    """Pure-JAX f32 reference (independent of the kernel code paths)."""
    dn = ("NCHW", "OIHW", "NCHW")
    y = jax.lax.conv_general_dilated(x, params["w1"], (1, 1), ((1, 1), (1, 1)),
                                     dimension_numbers=dn)
    y = jnp.maximum(y + params["b1"].reshape(1, -1, 1, 1), 0.0)
    y = jax.lax.reduce_window(y, -jnp.inf, jax.lax.max, (1, 1, 2, 2), (1, 1, 2, 2), "VALID")
    y = jax.lax.conv_general_dilated(y, params["w2"], (1, 1), ((1, 1), (1, 1)),
                                     dimension_numbers=dn)
    y = jnp.maximum(y + params["b2"].reshape(1, -1, 1, 1), 0.0)
    y = jax.lax.reduce_window(y, -jnp.inf, jax.lax.max, (1, 1, 2, 2), (1, 1, 2, 2), "VALID")
    y = y.reshape(y.shape[0], -1)
    y = jnp.maximum(y @ params["wfc1"].T + params["bfc1"], 0.0)
    return jax.nn.sigmoid(y @ params["wfc2"].T + params["bfc2"])


if __name__ == "__main__":
    key = jax.random.PRNGKey(0)
    kx, kparam = jax.random.split(key)
    # 48x48 input so the fc1 feature size is exactly 32*12*12, as the module requires.
    x = jax.random.normal(kx, (2, 3, 48, 48), jnp.float32)
    params = init_params(kparam)
    kp = prepare_params(params)

    roll_forward = _roll_is_forward()
    roll_bf16 = _roll_supports_bf16()
    fwd = jax.jit(functools.partial(cnn_forward, roll_forward=roll_forward,
                                    roll_bf16=roll_bf16))

    out = jax.block_until_ready(fwd(x, kp))
    assert out.shape == (2, 1), out.shape
    assert bool(jnp.all((out >= 0.0) & (out <= 1.0)))

    ref = jax.jit(reference_forward)(x, params)
    assert bool(jnp.allclose(out, ref, atol=2.5e-2, rtol=0.0)), (out, ref)
    print("KERNEL_OK")
</pallas_src>

<mosaic_0001>
module attributes {stable_mosaic.version = 11 : i64} {
  func.func @k(%arg0: memref<8x128xf32, #tpu.memory_space<vmem>>, %arg1: memref<8x128xf32, #tpu.memory_space<vmem>>) attributes {dimension_semantics = [], scalar_prefetch = 0 : i64, scratch_operands = 0 : i64, tpu.core_type = #tpu.core_type<tc>} {
    %c0 = arith.constant 0 : index
    %c0_0 = arith.constant 0 : index
    %0 = vector.load %arg0[%c0, %c0_0] : memref<8x128xf32, #tpu.memory_space<vmem>>, vector<8x128xf32>
    %c1_i32 = arith.constant 1 : i32
    %1 = tpu.dynamic_rotate %0 by %c1_i32 dim 1 : vector<8x128xf32>, i32 -> vector<8x128xf32>
    %c0_1 = arith.constant 0 : index
    %c0_2 = arith.constant 0 : index
    %2 = vector.load %arg1[%c0_1, %c0_2] : memref<8x128xf32, #tpu.memory_space<vmem>>, vector<8x128xf32>
    tpu.vector_store %arg1[%c0_1, %c0_2], %1 {strides = array<i32>} : memref<8x128xf32, #tpu.memory_space<vmem>>, vector<8x128xf32>,
    return
  }
}

</mosaic_0001>

<llo_original>
// kernel: tpu_custom_call.1
$region0: #{tpu_custom_call.1}
  #allocation0 [shape = 'u32[]', space=smem, size = 0x4, offset = 0x4, fixed_abs, tag = 'smem constant byte address 0x4 - core index']
  #allocation1 [shape = 'u32[144,128]{1,0:T(1,128)}', space=vmem, size = 0x12000, scoped, tag = 'internal scratch']
  %s0 = inlined_call_operand.hbm [shape: f32[8,128], index: 0, kind: input, shape index: {}]
  %s1 = inlined_call_operand.hbm [shape: f32[8,128], index: 1, kind: output, shape index: {}]
  %s2 = sld [smem:[#allocation0]]
  $region18: #{tpu_custom_call.1} parent=0
    _
  %s4 = ssub.s32 1, %s2
  %s5 = scalar_select 0, %s4, %s2
  $region1: #{tpu_custom_call.1} parent=0
    #allocation2 [shape = 'u8[4096]{0}', space=vmem, size = 0x1000, scoped, tag = 'input window, operand 0, single buffered']
    #allocation3 [shape = 's32[1]{0}', space=sflag, size = 0x4, scoped, tag = 'scoped memory for tpu_custom_call.1']
    #allocation4 [shape = 's32[1]{0}', space=sflag, size = 0x4, scoped, tag = 'scoped memory for tpu_custom_call.1']
    #allocation5 [shape = 'u8[4096]{0}', space=vmem, size = 0x1000, scoped, tag = 'output window, operand 0, single buffered']
    %6 = vsyncpa [#allocation3], 0
    %7 = vsyncpa [#allocation4], 0
    // Predicated region
    $region2: #{tpu_custom_call.1} parent=1 // pred_check
      _
    $region3: #{tpu_custom_call.1} parent=1 // pred_check_branch
      %9 = sbr.rel (0) target = $region5
    $region4: #{tpu_custom_call.1} parent=1 // pred_region
      %s11 = ssub.s32 128, 128
      %12 = vsyncadd [#allocation3], %s11
      %s14 = sshll.u32 [#allocation2], 4
      %s15 = int_to_ptr.vmem [resolvable:$true] %s14
      %17 = dma.hbm_to_vmem [thread:$0]  %s0, 128, %s15, [#allocation3]
    $region5: #{tpu_custom_call.1} parent=1 // pred_fallthru
      _
    // Predicated region
    $region6: #{tpu_custom_call.1} parent=1 // pred_check
      _
    $region7: #{tpu_custom_call.1} parent=1 // pred_check_branch
      %19 = sbr.rel (0) target = $region9
    $region8: #{tpu_custom_call.1} parent=1 // pred_region
      %20 = dma.done [#allocation3], 128
    $region9: #{tpu_custom_call.1} parent=1 // pred_fallthru
      _
    %v21 = vld [vmem:[#allocation2] sm:$0xff]
    %22 = vrot.lane.b32.xlu0 %v21, 1
    %v23 = vpop.permute.xlu0 %22
    %24 = vst [vmem:[#allocation5] sm:$0xff] %v23
    // Predicated region
    $region10: #{tpu_custom_call.1} parent=1 // pred_check
      _
    $region11: #{tpu_custom_call.1} parent=1 // pred_check_branch
      %26 = sbr.rel (0) target = $region13
    $region12: #{tpu_custom_call.1} parent=1 // pred_region
      %s28 = ssub.s32 128, 128
      %29 = vsyncadd [#allocation4], %s28
      %s31 = sshll.u32 [#allocation5], 4
      %s32 = int_to_ptr.vmem [resolvable:$true] %s31
      %34 = dma.vmem_to_hbm [thread:$0]  %s32, 128, %s1, [#allocation4]
    $region13: #{tpu_custom_call.1} parent=1 // pred_fallthru
      _
    // Predicated region
    $region14: #{tpu_custom_call.1} parent=1 // pred_check
      _
    $region15: #{tpu_custom_call.1} parent=1 // pred_check_branch
      %36 = sbr.rel (0) target = $region17
    $region16: #{tpu_custom_call.1} parent=1 // pred_region
      %37 = dma.done [#allocation4], 128
    $region17: #{tpu_custom_call.1} parent=1 // pred_fallthru
      _
    %38 = vsyncpa [#allocation3], 1
    %39 = vsyncpa [#allocation4], 1

</llo_original>
